<compile_context>
chip_gen: v7x
topology: tpu7x:2x2x1
jax: 0.10.0
libtpu: 0.0.40
codegen_flags: <defaults>
</compile_context>

<pallas_src>
import functools

import jax
import jax.numpy as jnp
from jax.experimental import pallas as pl
from jax.experimental.pallas import tpu as pltpu


def _reduction_kernel(x_ref, w_ref, b_ref, o_ref, *, negative_slope, use_relu):
    """Single-step fused Linear(+folded BN) + LeakyReLU: (tm,K) @ (K,E) -> epilogue -> out."""
    z = jnp.dot(x_ref[...], w_ref[...], preferred_element_type=jnp.float32)
    z = z + b_ref[...]                                   # Linear bias (BN folded in)
    if use_relu:
        z = jnp.where(z >= 0, z, negative_slope * z)     # LeakyReLU(0.1)
    o_ref[...] = z.astype(o_ref.dtype)


def fused_reduction(x, w, b, *, negative_slope=0.1, use_relu=True,
                    compute_dtype=jnp.bfloat16, tm_max=128):
    """y = LeakyReLU(x @ w + b), with eval-mode BatchNorm already folded into (w, b)."""
    M, K = x.shape
    Kw, E = w.shape
    assert K == Kw
    out_dtype = x.dtype

    # Row tiling: whole batch in one block when small (block == full dim, so no (8,128)
    # divisibility constraint); otherwise 128-row tiles (MXU height) with zero-padding.
    if M <= tm_max:
        tm, m_pad = M, M
    else:
        tm = tm_max
        m_pad = pl.cdiv(M, tm) * tm
        if m_pad != M:
            x = jnp.pad(x, ((0, m_pad - M), (0, 0)))

    x_c = x.astype(compute_dtype)
    w_c = w.astype(compute_dtype)
    b2 = b.reshape(1, E).astype(jnp.float32)

    kernel = functools.partial(_reduction_kernel,
                               negative_slope=negative_slope, use_relu=use_relu)

    out = pl.pallas_call(
        kernel,
        out_shape=jax.ShapeDtypeStruct((m_pad, E), out_dtype),
        grid_spec=pltpu.PrefetchScalarGridSpec(
            num_scalar_prefetch=0,
            grid=(m_pad // tm,),
            in_specs=[
                pl.BlockSpec((tm, K), lambda i: (i, 0)),   # x row tile
                pl.BlockSpec((K, E), lambda i: (0, 0)),    # full weight, resident in VMEM
                pl.BlockSpec((1, E), lambda i: (0, 0)),    # folded bias
            ],
            out_specs=pl.BlockSpec((tm, E), lambda i: (i, 0)),
        ),
        compiler_params=pltpu.CompilerParams(
            dimension_semantics=("parallel",)),            # row tiles shard across v7x TCs
    )(x_c, w_c, b2)

    return out[:M] if m_pad != M else out


def fold_bn_into_linear(w, b, bn_scale, bn_shift):
    """Fold eval-mode BatchNorm1d (scale, shift) into the preceding Linear."""
    return w * bn_scale[None, :], b * bn_scale + bn_shift


def pgfa_reduction_forward(pool_feat_list, params, *, num_parts, use_relu=True,
                           compute_dtype=jnp.bfloat16):
    """Mirrors PGFAReduction.forward with cfg.model_flow == 'train' (eval-mode numerics)."""
    # Fold the (shared) BatchNorm into both Linears once, outside the kernels.
    wg, bg = fold_bn_into_linear(params["w_global"], params["b_global"],
                                 params["bn_scale"], params["bn_shift"])
    wp, bp = fold_bn_into_linear(params["w_part"], params["b_part"],
                                 params["bn_scale"], params["bn_shift"])

    outs = [fused_reduction(pool_feat_list[0], wg, bg,
                            use_relu=use_relu, compute_dtype=compute_dtype)]

    # i == 1: all parts in ONE pallas_call. One contiguous transpose replaces num_parts
    # strided [:, :, j] HBM gathers; shared w_part is DMA'd once; MXU gets P*N rows.
    part_feat = pool_feat_list[1]                       # (N, part_feat_input_dim, num_parts)
    N, Kp, P = part_feat.shape
    assert P == num_parts
    part_rows = jnp.transpose(part_feat, (2, 0, 1)).reshape(P * N, Kp)
    part_out = fused_reduction(part_rows, wp, bp,
                               use_relu=use_relu, compute_dtype=compute_dtype)
    part_out = part_out.reshape(P, N, -1)
    outs.extend(part_out[j] for j in range(num_parts))
    return outs


def _reference(pool_feat_list, params, *, num_parts, use_relu=True):
    """Pure-JAX f32 reference (unfolded BN) for correctness checking."""
    def branch(x, w, b):
        z = x @ w + b
        z = z * params["bn_scale"] + params["bn_shift"]
        if use_relu:
            z = jnp.where(z >= 0, z, 0.1 * z)
        return z
    outs = [branch(pool_feat_list[0], params["w_global"], params["b_global"])]
    for j in range(num_parts):
        outs.append(branch(pool_feat_list[1][:, :, j],
                           params["w_part"], params["b_part"]))
    return outs


if __name__ == "__main__":
    # Small shapes consistent with the module:
    #   cfg.model.PGFA.global_input_dim    = 256
    #   cfg.model.PGFA.part_feat_input_dim = 128
    #   cfg.model.em_dim                   = 128
    #   cfg.model.num_parts                = 3
    N = 8
    GLOBAL_IN = 256
    PART_IN = 128
    EM = 128
    NUM_PARTS = 3

    key = jax.random.PRNGKey(0)
    k1, k2, k3, k4, k5, k6 = jax.random.split(key, 6)

    # Deterministic "kaiming-ish" parameter init (synthetic, not a checkpoint).
    w_global = jax.random.normal(k1, (GLOBAL_IN, EM), jnp.float32) * (2.0 / EM) ** 0.5
    b_global = jnp.zeros((EM,), jnp.float32)
    w_part = jax.random.normal(k2, (PART_IN, EM), jnp.float32) * (2.0 / EM) ** 0.5
    b_part = jnp.zeros((EM,), jnp.float32)

    # Shared BatchNorm1d (eval mode): gamma, beta, running stats.
    gamma = 1.0 + 0.02 * jax.random.normal(k3, (EM,), jnp.float32)
    beta = jnp.zeros((EM,), jnp.float32)
    running_mean = 0.1 * jax.random.normal(k4, (EM,), jnp.float32)
    running_var = jnp.abs(1.0 + 0.05 * jax.random.normal(k5, (EM,), jnp.float32))
    eps = 1e-5
    bn_scale = gamma / jnp.sqrt(running_var + eps)
    bn_shift = beta - running_mean * bn_scale

    params = dict(w_global=w_global, b_global=b_global,
                  w_part=w_part, b_part=b_part,
                  bn_scale=bn_scale, bn_shift=bn_shift)

    # out_dict['pool_feat_list']
    global_feat = jax.random.normal(k6, (N, GLOBAL_IN), jnp.float32)
    part_feat = jax.random.normal(jax.random.fold_in(key, 7),
                                  (N, PART_IN, NUM_PARTS), jnp.float32)
    pool_feat_list = [global_feat, part_feat]

    refs = _reference(pool_feat_list, params, num_parts=NUM_PARTS)

    # 1) f32 compute path: tight tolerance vs the f32 reference.
    outs_f32 = pgfa_reduction_forward(pool_feat_list, params, num_parts=NUM_PARTS,
                                      compute_dtype=jnp.float32)
    outs_f32 = [jax.block_until_ready(o) for o in outs_f32]
    assert len(outs_f32) == 1 + NUM_PARTS
    for o, r in zip(outs_f32, refs):
        assert o.shape == (N, EM)
        assert jnp.allclose(o, r, atol=5e-4, rtol=5e-4), "f32 path mismatch vs reference"

    # 2) bf16 MXU path (default; recommended for v6e/v7x): looser tolerance from
    #    bf16 input rounding, accumulation stays in f32.
    outs_bf16 = pgfa_reduction_forward(pool_feat_list, params, num_parts=NUM_PARTS,
                                       compute_dtype=jnp.bfloat16)
    outs_bf16 = [jax.block_until_ready(o) for o in outs_bf16]
    for o, r in zip(outs_bf16, refs):
        assert o.shape == (N, EM)
        assert jnp.allclose(o, r, atol=5e-2, rtol=5e-2), "bf16 path mismatch vs reference"

    print("KERNEL_OK")
</pallas_src>

<mosaic_0001>
module attributes {stable_mosaic.version = 11 : i64} {
  func.func @_reduction_kernel(%arg0: i32, %arg1: memref<8x256xf32, #tpu.memory_space<vmem>>, %arg2: memref<256x128xf32, #tpu.memory_space<vmem>>, %arg3: memref<1x128xf32, #tpu.memory_space<vmem>>, %arg4: memref<8x128xf32, #tpu.memory_space<vmem>>) attributes {dimension_semantics = [#tpu.dimension_semantics<parallel>], iteration_bounds = array<i64: 1>, scalar_prefetch = 0 : i64, scratch_operands = 0 : i64, tpu.core_type = #tpu.core_type<tc>, window_params = [{transform_indices = @transform_0, window_bounds = array<i64: 8, 256>}, {pipeline_mode = #tpu.pipeline_mode<synchronous>, transform_indices = @transform_1, window_bounds = array<i64: 256, 128>}, {pipeline_mode = #tpu.pipeline_mode<synchronous>, transform_indices = @transform_2, window_bounds = array<i64: 1, 128>}, {transform_indices = @transform_3, window_bounds = array<i64: 8, 128>}]} {
    %c0 = arith.constant 0 : index
    %c0_0 = arith.constant 0 : index
    %0 = vector.load %arg1[%c0, %c0_0] : memref<8x256xf32, #tpu.memory_space<vmem>>, vector<8x256xf32>
    %c0_1 = arith.constant 0 : index
    %c0_2 = arith.constant 0 : index
    %1 = vector.load %arg2[%c0_1, %c0_2] : memref<256x128xf32, #tpu.memory_space<vmem>>, vector<256x128xf32>
    %cst = arith.constant dense<0.000000e+00> : vector<8x128xf32>
    %2 = tpu.matmul %0, %1, %cst {dimension_numbers = #tpu.dot_dimension_numbers<[1], [0], [0], [1], [0, 0, 1, 1], [], []>} : vector<8x256xf32>, vector<256x128xf32>, vector<8x128xf32> -> vector<8x128xf32>
    %c0_3 = arith.constant 0 : index
    %c0_4 = arith.constant 0 : index
    %3 = vector.load %arg3[%c0_3, %c0_4] : memref<1x128xf32, #tpu.memory_space<vmem>>, vector<1x128xf32>
    %4 = vector.broadcast %3 : vector<1x128xf32> to vector<8x128xf32>
    %5 = arith.addf %2, %4 : vector<8x128xf32>
    %cst_5 = arith.constant 0.000000e+00 : f32
    %6 = vector.broadcast %cst_5 : f32 to vector<8x128xf32>
    %7 = arith.cmpf oge, %5, %6 : vector<8x128xf32>
    %cst_6 = arith.constant 1.000000e-01 : f32
    %8 = vector.broadcast %cst_6 : f32 to vector<8x128xf32>
    %9 = arith.mulf %8, %5 : vector<8x128xf32>
    %10 = arith.select %7, %5, %9 : vector<8x128xi1>, vector<8x128xf32>
    %c0_7 = arith.constant 0 : index
    %c0_8 = arith.constant 0 : index
    %11 = vector.load %arg4[%c0_7, %c0_8] : memref<8x128xf32, #tpu.memory_space<vmem>>, vector<8x128xf32>
    tpu.vector_store %arg4[%c0_7, %c0_8], %10 {strides = array<i32>} : memref<8x128xf32, #tpu.memory_space<vmem>>, vector<8x128xf32>,
    return
  }
  func.func @transform_0(%arg0: i32) -> (i32, i32) {
    %c0_i32 = arith.constant 0 : i32
    %c0_i32_0 = arith.constant 0 : i32
    return %arg0, %c0_i32 : i32, i32
  }
  func.func @transform_1(%arg0: i32) -> (i32, i32) {
    %c0_i32 = arith.constant 0 : i32
    %c0_i32_0 = arith.constant 0 : i32
    %c0_i32_1 = arith.constant 0 : i32
    return %c0_i32, %c0_i32_0 : i32, i32
  }
  func.func @transform_2(%arg0: i32) -> (i32, i32) {
    %c0_i32 = arith.constant 0 : i32
    %c0_i32_0 = arith.constant 0 : i32
    %c0_i32_1 = arith.constant 0 : i32
    return %c0_i32, %c0_i32_0 : i32, i32
  }
  func.func @transform_3(%arg0: i32) -> (i32, i32) {
    %c0_i32 = arith.constant 0 : i32
    %c0_i32_0 = arith.constant 0 : i32
    return %arg0, %c0_i32 : i32, i32
  }
}

</mosaic_0001>

<llo_original>
// kernel: tpu_custom_call.1
$region0: #{tpu_custom_call.1}
  #allocation0 [shape = 'u32[]', space=smem, size = 0x4, offset = 0x4, fixed_abs, tag = 'smem constant byte address 0x4 - core index']
  #allocation1 [shape = 'u32[144,128]{1,0:T(1,128)}', space=vmem, size = 0x12000, scoped, tag = 'internal scratch']
  %s0 = inlined_call_operand.hbm [shape: f32[8,256], index: 0, kind: input, shape index: {}]
  %s1 = inlined_call_operand.hbm [shape: f32[256,128], index: 1, kind: input, shape index: {}]
  %s2 = inlined_call_operand.vmem [shape: f32[1,128], index: 2, kind: input, shape index: {}]
  %s3 = inlined_call_operand.hbm [shape: f32[8,128], index: 3, kind: output, shape index: {}]
  %s4 = sld [smem:[#allocation0]]
  $region30: #{tpu_custom_call.1} parent=0
    _
  %s6 = ssub.s32 1, %s4
  %s7 = scalar_select 0, %s6, %s4
  $region1: #{tpu_custom_call.1} parent=0
    #allocation2 [shape = 'u8[8192]{0}', space=vmem, size = 0x2000, scoped, tag = 'input window, operand 0, single buffered']
    #allocation3 [shape = 's32[1]{0}', space=sflag, size = 0x4, scoped, tag = 'scoped memory for tpu_custom_call.1']
    #allocation4 [shape = 's32[1]{0}', space=sflag, size = 0x4, scoped, tag = 'scoped memory for tpu_custom_call.1']
    #allocation5 [shape = 'u8[131072]{0}', space=vmem, size = 0x20000, scoped, tag = 'input window, operand 1, single buffered']
    #allocation6 [shape = 's32[1]{0}', space=sflag, size = 0x4, scoped, tag = 'scoped memory for tpu_custom_call.1']
    #allocation7 [shape = 'u8[4096]{0}', space=vmem, size = 0x1000, scoped, tag = 'output window, operand 0, single buffered']
    %8 = vsyncpa [#allocation3], 0
    %9 = vsyncpa [#allocation6], 0
    %10 = vsyncpa [#allocation4], 0
    // Predicated region
    $region2: #{tpu_custom_call.1} parent=1 // pred_check
      _
    $region3: #{tpu_custom_call.1} parent=1 // pred_check_branch
      %12 = sbr.rel (0) target = $region5
    $region4: #{tpu_custom_call.1} parent=1 // pred_region
      %s14 = ssub.s32 256, 256
      %15 = vsyncadd [#allocation3], %s14
      %s17 = sshll.u32 [#allocation2], 4
      %s18 = int_to_ptr.vmem [resolvable:$true] %s17
      %20 = dma.hbm_to_vmem [thread:$0]  %s0, 256, %s18, [#allocation3]
    $region5: #{tpu_custom_call.1} parent=1 // pred_fallthru
      _
    // Predicated region
    $region6: #{tpu_custom_call.1} parent=1 // pred_check
      _
    $region7: #{tpu_custom_call.1} parent=1 // pred_check_branch
      %22 = sbr.rel (0) target = $region9
    $region8: #{tpu_custom_call.1} parent=1 // pred_region
      %s24 = ssub.s32 4096, 4096
      %25 = vsyncadd [#allocation6], %s24
      %s26 = sshll.u32 [#allocation5], 4
      %s27 = int_to_ptr.vmem [resolvable:$true] %s26
      %32 = dma.hbm_to_vmem [thread:$0]  %s1, 4096, %s27, [#allocation6], 128, 128, 8
    $region9: #{tpu_custom_call.1} parent=1 // pred_fallthru
      _
    // Predicated region
    $region10: #{tpu_custom_call.1} parent=1 // pred_check
      _
    $region11: #{tpu_custom_call.1} parent=1 // pred_check_branch
      %34 = sbr.rel (0) target = $region13
    $region12: #{tpu_custom_call.1} parent=1 // pred_region
      _
    $region13: #{tpu_custom_call.1} parent=1 // pred_fallthru
      _
    // Predicated region
    $region14: #{tpu_custom_call.1} parent=1 // pred_check
      _
    $region15: #{tpu_custom_call.1} parent=1 // pred_check_branch
      %36 = sbr.rel (0) target = $region17
    $region16: #{tpu_custom_call.1} parent=1 // pred_region
      %37 = dma.done [#allocation3], 256
    $region17: #{tpu_custom_call.1} parent=1 // pred_fallthru
      _
    // Predicated region
    $region18: #{tpu_custom_call.1} parent=1 // pred_check
      _
    $region19: #{tpu_custom_call.1} parent=1 // pred_check_branch
      %39 = sbr.rel (0) target = $region21
    $region20: #{tpu_custom_call.1} parent=1 // pred_region
      %40 = dma.done [#allocation6], 4096
    $region21: #{tpu_custom_call.1} parent=1 // pred_fallthru
      _
    %v41 = vld [vmem:[#allocation2] sm:$0xff]
    %v42 = vld [vmem:[#allocation2 + $0x8] sm:$0xff]
    %v43 = vld [vmem:[#allocation5] sm:$0xff]
    %v44 = vld [vmem:[#allocation5 + $0x8] sm:$0xff]
    %v45 = vld [vmem:[#allocation5 + $0x10] sm:$0xff]
    %v46 = vld [vmem:[#allocation5 + $0x18] sm:$0xff]
    %v47 = vld [vmem:[#allocation5 + $0x20] sm:$0xff]
    %v48 = vld [vmem:[#allocation5 + $0x28] sm:$0xff]
    %v49 = vld [vmem:[#allocation5 + $0x30] sm:$0xff]
    %v50 = vld [vmem:[#allocation5 + $0x38] sm:$0xff]
    %v51 = vld [vmem:[#allocation5 + $0x40] sm:$0xff]
    %v52 = vld [vmem:[#allocation5 + $0x48] sm:$0xff]
    %v53 = vld [vmem:[#allocation5 + $0x50] sm:$0xff]
    %v54 = vld [vmem:[#allocation5 + $0x58] sm:$0xff]
    %v55 = vld [vmem:[#allocation5 + $0x60] sm:$0xff]
    %v56 = vld [vmem:[#allocation5 + $0x68] sm:$0xff]
    %v57 = vld [vmem:[#allocation5 + $0x70] sm:$0xff]
    %v58 = vld [vmem:[#allocation5 + $0x78] sm:$0xff]
    %v59 = vld [vmem:[#allocation5 + $0x80] sm:$0xff]
    %v60 = vld [vmem:[#allocation5 + $0x88] sm:$0xff]
    %v61 = vld [vmem:[#allocation5 + $0x90] sm:$0xff]
    %v62 = vld [vmem:[#allocation5 + $0x98] sm:$0xff]
    %v63 = vld [vmem:[#allocation5 + $0xa0] sm:$0xff]
    %v64 = vld [vmem:[#allocation5 + $0xa8] sm:$0xff]
    %v65 = vld [vmem:[#allocation5 + $0xb0] sm:$0xff]
    %v66 = vld [vmem:[#allocation5 + $0xb8] sm:$0xff]
    %v67 = vld [vmem:[#allocation5 + $0xc0] sm:$0xff]
    %v68 = vld [vmem:[#allocation5 + $0xc8] sm:$0xff]
    %v69 = vld [vmem:[#allocation5 + $0xd0] sm:$0xff]
    %v70 = vld [vmem:[#allocation5 + $0xd8] sm:$0xff]
    %v71 = vld [vmem:[#allocation5 + $0xe0] sm:$0xff]
    %v72 = vld [vmem:[#allocation5 + $0xe8] sm:$0xff]
    %v73 = vld [vmem:[#allocation5 + $0xf0] sm:$0xff]
    %v74 = vld [vmem:[#allocation5 + $0xf8] sm:$0xff]
    %v75 = vld [vmem:[%s2] sm:$0x1]
    %v77 = vlaneseq
    %v78 = vshrl.u32 %v77, 7
    %v79 = vsub.s32 0, %v78
    %v80 = vrot.slane %v75, %v79
    %82 = vmatprep.subr.mxu0 0.0
    %83 = vmatpush1.msra.mxu0 %v43
    %84 = vmatprep.subr.mxu0 0.0
    %85 = vmatpush1.msra.mxu0 %v44
    %86 = vmatprep.subr.mxu0 0.0
    %87 = vmatpush1.msra.mxu0 %v45
    %88 = vmatprep.subr.mxu0 0.0
    %89 = vmatpush1.msra.mxu0 %v46
    %90 = vmatprep.subr.mxu0 0.0
    %91 = vmatpush1.msra.mxu0 %v47
    %92 = vmatprep.subr.mxu0 0.0
    %93 = vmatpush1.msra.mxu0 %v48
    %94 = vmatprep.subr.mxu0 0.0
    %95 = vmatpush1.msra.mxu0 %v49
    %96 = vmatprep.subr.mxu0 0.0
    %97 = vmatpush1.msra.mxu0 %v50
    %98 = vmatprep.subr.mxu0 0.0
    %99 = vmatpush1.msra.mxu0 %v51
    %100 = vmatprep.subr.mxu0 0.0
    %101 = vmatpush1.msra.mxu0 %v52
    %102 = vmatprep.subr.mxu0 0.0
    %103 = vmatpush1.msra.mxu0 %v53
    %104 = vmatprep.subr.mxu0 0.0
    %105 = vmatpush1.msra.mxu0 %v54
    %106 = vmatprep.subr.mxu0 0.0
    %107 = vmatpush1.msra.mxu0 %v55
    %108 = vmatprep.subr.mxu0 0.0
    %109 = vmatpush1.msra.mxu0 %v56
    %110 = vmatprep.subr.mxu0 0.0
    %111 = vmatpush1.msra.mxu0 %v57
    %112 = vmatprep.subr.mxu0 0.0
    %113 = vmatpush1.msra.mxu0 %v58
    %114 = vmatprep.subr.mxu0 0.0
    %115 = vmatpush1.msra.mxu0 %v59
    %116 = vmatprep.subr.mxu0 0.0
    %117 = vmatpush1.msra.mxu0 %v60
    %118 = vmatprep.subr.mxu0 0.0
    %119 = vmatpush1.msra.mxu0 %v61
    %120 = vmatprep.subr.mxu0 0.0
    %121 = vmatpush1.msra.mxu0 %v62
    %122 = vmatprep.subr.mxu0 0.0
    %123 = vmatpush1.msra.mxu0 %v63
    %124 = vmatprep.subr.mxu0 0.0
    %125 = vmatpush1.msra.mxu0 %v64
    %126 = vmatprep.subr.mxu0 0.0
    %127 = vmatpush1.msra.mxu0 %v65
    %128 = vmatprep.subr.mxu0 0.0
    %129 = vmatpush1.msra.mxu0 %v66
    %130 = vmatprep.subr.mxu0 0.0
    %131 = vmatpush1.msra.mxu0 %v67
    %132 = vmatprep.subr.mxu0 0.0
    %133 = vmatpush1.msra.mxu0 %v68
    %134 = vmatprep.subr.mxu0 0.0
    %135 = vmatpush1.msra.mxu0 %v69
    %136 = vmatprep.subr.mxu0 0.0
    %137 = vmatpush1.msra.mxu0 %v70
    %138 = vmatprep.subr.mxu0 0.0
    %139 = vmatpush1.msra.mxu0 %v71
    %140 = vmatprep.subr.mxu0 0.0
    %141 = vmatpush1.msra.mxu0 %v72
    %142 = vmatprep.subr.mxu0 0.0
    %143 = vmatpush1.msra.mxu0 %v73
    %144 = vmatprep.subr.mxu0 0.0
    %145 = vmatpush1.msra.mxu0 %v74
    %146 = vmatprep.mubr.f32.mxu0 %v42
    %147 = vmatmul.mubr.f32.gmra.mrb[0].mxu0 %v41
    %v148 = vpop.f32.mrb[0].mxu0
    %v149 = vadd.f32 %v80, %v148
    %v150 = vpop.f32.mrb[0].mxu0
    %151 = vdwg.mxu0
    %vm152 = vcmp.ge.f32.partialorder %v149, 0.0
    %v153 = vmul.f32 %v149, 0.1
    %v154 = vsel %vm152, %v149, %v153
    %155 = vst [vmem:[#allocation7] sm:$0xff] %v154
    // Predicated region
    $region22: #{tpu_custom_call.1} parent=1 // pred_check
      _
    $region23: #{tpu_custom_call.1} parent=1 // pred_check_branch
      %157 = sbr.rel (0) target = $region25
    $region24: #{tpu_custom_call.1} parent=1 // pred_region
      %s159 = ssub.s32 128, 128
      %160 = vsyncadd [#allocation4], %s159
      %s162 = sshll.u32 [#allocation7], 4
      %s163 = int_to_ptr.vmem [resolvable:$true] %s162
      %165 = dma.vmem_to_hbm [thread:$0]  %s163, 128, %s3, [#allocation4]
    $region25: #{tpu_custom_call.1} parent=1 // pred_fallthru
      _
    // Predicated region
    $region26: #{tpu_custom_call.1} parent=1 // pred_check
      _
    $region27: #{tpu_custom_call.1} parent=1 // pred_check_branch
      %167 = sbr.rel (0) target = $region29
    $region28: #{tpu_custom_call.1} parent=1 // pred_region
      %168 = dma.done [#allocation4], 128
    $region29: #{tpu_custom_call.1} parent=1 // pred_fallthru
      _
    %169 = vsyncpa [#allocation3], 1
    %170 = vsyncpa [#allocation6], 1
    %171 = vsyncpa [#allocation4], 1

</llo_original>
